<compile_context>
chip_gen: v7x
topology: tpu7x:2x2x1
jax: 0.10.0
libtpu: 0.0.40
codegen_flags: <defaults>
</compile_context>

<pallas_src>
import numpy as np
import jax
import jax.numpy as jnp
from jax.experimental import pallas as pl
from jax.experimental.pallas import tpu as pltpu

TRAJ_N = 13                                  # 13 waypoints, traj_size = 26
POSE_N = 24                                  # 24 SMPL joints, pose_size = 72
VEL_N = 2
FEAT = 2 * TRAJ_N + 3 * POSE_N + VEL_N       # 100
FEAT_XY = 2 * TRAJ_N + 2 * POSE_N + VEL_N    # 76  (packed xy/vel slab rows)
FC1 = FEAT // 2 - 1                          # 49
FC2 = FC1 // 2                               # 24
HIDE_JOINTS = (4, 8, 9, 10, 11)              # hide_toe + hide_spine
EPS = 1e-10

# row offsets of waypoint[1].x / waypoint[1].y inside the packed (76, B) slab
ROW_TX1 = 1
ROW_TY1 = TRAJ_N + 1


# --------------------------------------------------------------------------- kernel
def value_pose_kernel(xy_ref, z_ref, wa_ref, wb_ref, wz_ref, b1_ref,
                      w2_ref, b2_ref, w3_ref, b3_ref, out_ref):
    f32, bf16 = jnp.float32, jnp.bfloat16

    xy = xy_ref[...]                                    # (76, TB) f32

    # ---- heading of waypoint[1]: c = cos(atan2(y,x)), s = sin(atan2(y,x)) --------
    x1 = xy[ROW_TX1:ROW_TX1 + 1, :]                     # (1, TB)
    y1 = xy[ROW_TY1:ROW_TY1 + 1, :]
    x1 = jnp.where(jnp.abs(x1) < EPS, EPS, x1)
    inv_r = jax.lax.rsqrt(x1 * x1 + y1 * y1)            # EUP slot
    c = x1 * inv_r
    s = y1 * inv_r

    # ---- fc1 with the rotation folded into the matmul (bf16 MXU, f32 acc) --------
    xy_b = xy.astype(bf16)
    ya = jnp.dot(wa_ref[...], xy_b, preferred_element_type=f32)          # (49, TB)
    yb = jnp.dot(wb_ref[...], xy_b, preferred_element_type=f32)          # (49, TB)
    yz = jnp.dot(wz_ref[...], z_ref[...].astype(bf16),
                 preferred_element_type=f32)                             # (49, TB)
    h1 = jnp.maximum(c * ya + s * yb + yz + b1_ref[...], 0.0)            # (49, TB)

    # ---- fc2 -> relu -------------------------------------------------------------
    h2 = jnp.dot(w2_ref[...], h1.astype(bf16),
                 preferred_element_type=f32) + b2_ref[...]
    h2 = jnp.maximum(h2, 0.0)                                            # (24, TB)

    # ---- fc3 (1, 24) @ (24, TB) -> sigmoid, lane-dense store ----------------------
    logit = jnp.dot(w3_ref[...], h2.astype(bf16),
                    preferred_element_type=f32) + b3_ref[...]            # (1, TB)
    out_ref[...] = 1.0 / (1.0 + jnp.exp(-logit))


# --------------------------------------------------------------------------- wrapper
def _round_up(x, m):
    return (x + m - 1) // m * m


def prepare_params(w1, b1, w2, b2, w3, b3):
    """Build feature-major, rotation-folded, hide-joint-masked bf16 weights.

    w1 is (FEAT, FC1) in the PyTorch obs column order: traj interleaved
    (x0,y0,x1,y1,...), pose interleaved (x0,y0,z0,...), then vel (vx, vy)."""
    f32, bf16 = jnp.float32, jnp.bfloat16
    w1 = jnp.asarray(w1, f32)
    w_tx = w1[0:2 * TRAJ_N:2]                          # (13, 49)
    w_ty = w1[1:2 * TRAJ_N:2]                          # (13, 49)
    pose = w1[2 * TRAJ_N:2 * TRAJ_N + 3 * POSE_N]
    keep = jnp.ones((POSE_N, 1), f32).at[jnp.array(HIDE_JOINTS), :].set(0.0)
    w_px = pose[0::3] * keep                           # (24, 49)
    w_py = pose[1::3] * keep
    w_pz = pose[2::3] * keep
    w_vx = w1[FEAT - 2:FEAT - 1]                       # (1, 49)
    w_vy = w1[FEAT - 1:FEAT]                           # (1, 49)

    # rotated-feature contribution = c*(x*Wx + y*Wy) + s*(y*Wx - x*Wy)
    wa = jnp.concatenate([w_tx, w_ty, w_px, w_py, w_vx, w_vy], axis=0).T    # (49, 76)
    wb = jnp.concatenate([-w_ty, w_tx, -w_py, w_px, -w_vy, w_vx], axis=0).T  # (49, 76)
    wz = w_pz.T                                                              # (49, 24)

    return (wa.astype(bf16), wb.astype(bf16), wz.astype(bf16),
            jnp.asarray(b1, f32).reshape(FC1, 1),
            jnp.asarray(w2, f32).T.astype(bf16),        # (24, 49)
            jnp.asarray(b2, f32).reshape(FC2, 1),
            jnp.asarray(w3, f32).T.astype(bf16),        # (1, 24)
            jnp.asarray(b3, f32).reshape(1, 1))


def _pack_feature_major(waypoint_traj, init_pose, init_vel):
    """Pack inputs into two dense feature-major slabs: (76, B) xy/vel and (24, B) z."""
    xy = jnp.concatenate([
        waypoint_traj[:, :, 0],      # tx (B, 13)
        waypoint_traj[:, :, 1],      # ty (B, 13)
        init_pose[:, :, 0],          # px (B, 24)
        init_pose[:, :, 1],          # py (B, 24)
        init_vel,                    # vx, vy (B, 2)
    ], axis=1).astype(jnp.float32)
    z = init_pose[:, :, 2].astype(jnp.float32)
    return xy.T, z.T                 # (76, B), (24, B)


def value_pose_net_forward(waypoint_traj, init_pose, init_vel, params, *, block_b=4096):
    """waypoint_traj: (B,13,2), init_pose: (B,24,3), init_vel: (B,2) -> (B,1)."""
    B = waypoint_traj.shape[0]
    b128 = _round_up(B, 128)
    # TB multiple of 128 (lane axis); cap so the grid has >=2 steps when possible so
    # both v7x TensorCores get work ("parallel" axis).
    TB = min(block_b, max(128, _round_up((b128 + 1) // 2, 128)))
    Bp = _round_up(B, TB)

    xy, z = _pack_feature_major(waypoint_traj, init_pose, init_vel)
    if Bp != B:
        xy = jnp.pad(xy, ((0, 0), (0, Bp - B)))
        z = jnp.pad(z, ((0, 0), (0, Bp - B)))

    wa, wb, wz, b1, w2t, b2, w3t, b3 = params

    act = lambda rows: pl.BlockSpec((rows, TB), lambda i: (0, i))
    const = lambda a: pl.BlockSpec(a.shape, lambda i: (0, 0))   # VMEM-resident, no re-DMA

    out = pl.pallas_call(
        value_pose_kernel,
        out_shape=jax.ShapeDtypeStruct((1, Bp), jnp.float32),
        grid=(Bp // TB,),
        in_specs=[
            act(FEAT_XY), act(POSE_N),
            const(wa), const(wb), const(wz), const(b1),
            const(w2t), const(b2), const(w3t), const(b3),
        ],
        out_specs=pl.BlockSpec((1, TB), lambda i: (0, i)),
        compiler_params=pltpu.CompilerParams(dimension_semantics=("parallel",)),
    )(xy, z, wa, wb, wz, b1, w2t, b2, w3t, b3)
    return out[0, :B].reshape(B, 1)


# --------------------------------------------------------------------------- references
def xavier_uniform(key, fan_in, fan_out):
    bound = float(np.sqrt(6.0 / (fan_in + fan_out)))
    return jax.random.uniform(key, (fan_in, fan_out), jnp.float32, -bound, bound)


def reference_forward_matched(waypoint_traj, init_pose, init_vel, params):
    """Pure-JAX reference matched to the kernel's numerics (rotation folded into fc1,
    bf16 matmul inputs, f32 accumulation)."""
    f32, bf16 = jnp.float32, jnp.bfloat16
    wa, wb, wz, b1, w2t, b2, w3t, b3 = params
    xy, z = _pack_feature_major(waypoint_traj, init_pose, init_vel)
    x1 = xy[ROW_TX1:ROW_TX1 + 1]
    y1 = xy[ROW_TY1:ROW_TY1 + 1]
    x1 = jnp.where(jnp.abs(x1) < EPS, EPS, x1)
    inv_r = jax.lax.rsqrt(x1 * x1 + y1 * y1)
    c, s = x1 * inv_r, y1 * inv_r
    ya = jnp.dot(wa, xy.astype(bf16), preferred_element_type=f32)
    yb = jnp.dot(wb, xy.astype(bf16), preferred_element_type=f32)
    yz = jnp.dot(wz, z.astype(bf16), preferred_element_type=f32)
    h1 = jnp.maximum(c * ya + s * yb + yz + b1, 0.0)
    h2 = jnp.maximum(jnp.dot(w2t, h1.astype(bf16), preferred_element_type=f32) + b2, 0.0)
    logit = jnp.dot(w3t, h2.astype(bf16), preferred_element_type=f32) + b3
    return (1.0 / (1.0 + jnp.exp(-logit))).T            # (B, 1)


def _build_obs(waypoint_traj, init_pose, init_vel):
    """Exact PyTorch ValuePoseNet rotation + hide-joints + obs concat (f32)."""
    B = waypoint_traj.shape[0]
    hi = jax.lax.Precision.HIGHEST
    x_vel = waypoint_traj[:, 1, 0]
    y_vel = waypoint_traj[:, 1, 1]
    near = jnp.abs(x_vel) < EPS
    x_vel = x_vel * (~near) + near * EPS
    ang = jnp.arctan2(y_vel, x_vel)
    c, s = jnp.cos(ang), jnp.sin(ang)
    R = jnp.stack([jnp.stack([c, -s], -1), jnp.stack([s, c], -1)], -2)   # (B,2,2)
    traj_r = jnp.einsum('bij,bjk->bik', waypoint_traj, R, precision=hi)
    pose_xy = jnp.einsum('bij,bjk->bik', init_pose[..., :2], R, precision=hi)
    pose = init_pose.at[..., :2].set(pose_xy)
    vel = jnp.einsum('bij,bjk->bik', init_vel[:, None, :], R, precision=hi)[:, 0]
    pose = pose.at[:, jnp.array(HIDE_JOINTS)].set(0.0)
    return jnp.concatenate(
        [traj_r.reshape(B, -1), pose.reshape(B, -1), vel.reshape(B, -1)], axis=-1)


def reference_forward_f32(waypoint_traj, init_pose, init_vel, w1, b1, w2, b2, w3, b3):
    """Full-f32 reference with exact PyTorch ValuePoseNet.forward_full semantics."""
    hi = jax.lax.Precision.HIGHEST
    obs = _build_obs(waypoint_traj, init_pose, init_vel)
    h1 = jax.nn.relu(jnp.dot(obs, w1, precision=hi) + b1[0])
    h2 = jax.nn.relu(jnp.dot(h1, w2, precision=hi) + b2[0])
    return jax.nn.sigmoid(jnp.dot(h2, w3, precision=hi) + b3[0])


# --------------------------------------------------------------------------- main
if __name__ == "__main__":
    B = 512          # two grid steps of TB=256
    key = jax.random.PRNGKey(0)
    k = jax.random.split(key, 6)

    waypoint_traj = jax.random.normal(k[0], (B, TRAJ_N, 2), jnp.float32)
    init_pose = 0.3 * jax.random.normal(k[1], (B, POSE_N, 3), jnp.float32)
    init_vel = jax.random.normal(k[2], (B, VEL_N), jnp.float32)

    # deterministic synthetic params (xavier_uniform weights, zero biases as in __init__)
    w1 = xavier_uniform(k[3], FEAT, FC1)        # (100, 49), torch obs column order
    w2 = xavier_uniform(k[4], FC1, FC2)         # (49, 24)
    w3 = xavier_uniform(k[5], FC2, 1)           # (24, 1)
    b1 = jnp.zeros((1, FC1), jnp.float32)
    b2 = jnp.zeros((1, FC2), jnp.float32)
    b3 = jnp.zeros((1, 1), jnp.float32)

    params = prepare_params(w1, b1, w2, b2, w3, b3)

    out = value_pose_net_forward(waypoint_traj, init_pose, init_vel, params)
    out = jax.block_until_ready(out)
    assert out.shape == (B, 1)

    # tight check vs matched-precision (folded-rotation, bf16-matmul) reference
    ref_m = reference_forward_matched(waypoint_traj, init_pose, init_vel, params)
    np.testing.assert_allclose(np.asarray(out), np.asarray(ref_m), rtol=1e-3, atol=2e-4)

    # loose check vs full-f32 PyTorch-semantics reference (documents bf16 matmul error)
    ref_f = reference_forward_f32(waypoint_traj, init_pose, init_vel, w1, b1, w2, b2, w3, b3)
    np.testing.assert_allclose(np.asarray(out), np.asarray(ref_f), rtol=2e-2, atol=2e-2)

    # ragged batch (exercises padding to a multiple of TB=128, grid of 2)
    Bs = 200
    out_s = value_pose_net_forward(waypoint_traj[:Bs], init_pose[:Bs], init_vel[:Bs], params)
    out_s = jax.block_until_ready(out_s)
    np.testing.assert_allclose(np.asarray(out_s), np.asarray(out[:Bs]), rtol=1e-4, atol=1e-5)

    print("KERNEL_OK")
</pallas_src>

<mosaic_0001>
module attributes {stable_mosaic.version = 11 : i64} {
  func.func @value_pose_kernel(%arg0: i32, %arg1: memref<76x256xf32, #tpu.memory_space<vmem>>, %arg2: memref<24x256xf32, #tpu.memory_space<vmem>>, %arg3: memref<49x76xbf16, #tpu.memory_space<vmem>>, %arg4: memref<49x76xbf16, #tpu.memory_space<vmem>>, %arg5: memref<49x24xbf16, #tpu.memory_space<vmem>>, %arg6: memref<49x1xf32, #tpu.memory_space<vmem>>, %arg7: memref<24x49xbf16, #tpu.memory_space<vmem>>, %arg8: memref<24x1xf32, #tpu.memory_space<vmem>>, %arg9: memref<1x24xbf16, #tpu.memory_space<vmem>>, %arg10: memref<1x1xf32, #tpu.memory_space<vmem>>, %arg11: memref<1x256xf32, #tpu.memory_space<vmem>>) attributes {dimension_semantics = [#tpu.dimension_semantics<parallel>], iteration_bounds = array<i64: 2>, scalar_prefetch = 0 : i64, scratch_operands = 0 : i64, tpu.core_type = #tpu.core_type<tc>, window_params = [{transform_indices = @transform_0, window_bounds = array<i64: 76, 256>}, {transform_indices = @transform_1, window_bounds = array<i64: 24, 256>}, {pipeline_mode = #tpu.pipeline_mode<synchronous>, transform_indices = @transform_2, window_bounds = array<i64: 49, 76>}, {pipeline_mode = #tpu.pipeline_mode<synchronous>, transform_indices = @transform_3, window_bounds = array<i64: 49, 76>}, {pipeline_mode = #tpu.pipeline_mode<synchronous>, transform_indices = @transform_4, window_bounds = array<i64: 49, 24>}, {pipeline_mode = #tpu.pipeline_mode<synchronous>, transform_indices = @transform_5, window_bounds = array<i64: 49, 1>}, {pipeline_mode = #tpu.pipeline_mode<synchronous>, transform_indices = @transform_6, window_bounds = array<i64: 24, 49>}, {pipeline_mode = #tpu.pipeline_mode<synchronous>, transform_indices = @transform_7, window_bounds = array<i64: 24, 1>}, {pipeline_mode = #tpu.pipeline_mode<synchronous>, transform_indices = @transform_8, window_bounds = array<i64: 1, 24>}, {pipeline_mode = #tpu.pipeline_mode<synchronous>, transform_indices = @transform_9, window_bounds = array<i64: 1, 1>}, {transform_indices = @transform_10, window_bounds = array<i64: 1, 256>}]} {
    %c0 = arith.constant 0 : index
    %c0_0 = arith.constant 0 : index
    %0 = vector.load %arg1[%c0, %c0_0] : memref<76x256xf32, #tpu.memory_space<vmem>>, vector<76x256xf32>
    %1 = vector.extract_strided_slice %0 {offsets = [1, 0], sizes = [1, 256], strides = [1, 1]} : vector<76x256xf32> to vector<1x256xf32>
    %2 = vector.extract_strided_slice %0 {offsets = [14, 0], sizes = [1, 256], strides = [1, 1]} : vector<76x256xf32> to vector<1x256xf32>
    %3 = math.absf %1 : vector<1x256xf32>
    %cst = arith.constant 1.000000e-10 : f32
    %4 = vector.broadcast %cst : f32 to vector<1x256xf32>
    %5 = arith.cmpf olt, %3, %4 : vector<1x256xf32>
    %cst_1 = arith.constant 1.000000e-10 : f32
    %6 = vector.broadcast %cst_1 : f32 to vector<1x256xf32>
    %7 = arith.select %5, %6, %1 : vector<1x256xi1>, vector<1x256xf32>
    %8 = arith.mulf %7, %7 : vector<1x256xf32>
    %9 = arith.mulf %2, %2 : vector<1x256xf32>
    %10 = arith.addf %8, %9 : vector<1x256xf32>
    %11 = math.rsqrt %10 : vector<1x256xf32>
    %12 = arith.mulf %7, %11 : vector<1x256xf32>
    %13 = arith.mulf %2, %11 : vector<1x256xf32>
    %14 = arith.truncf %0 : vector<76x256xf32> to vector<76x256xbf16>
    %c0_2 = arith.constant 0 : index
    %c0_3 = arith.constant 0 : index
    %15 = vector.load %arg3[%c0_2, %c0_3] : memref<49x76xbf16, #tpu.memory_space<vmem>>, vector<49x76xbf16>
    %cst_4 = arith.constant dense<0.000000e+00> : vector<49x256xf32>
    %16 = tpu.matmul %15, %14, %cst_4 {dimension_numbers = #tpu.dot_dimension_numbers<[1], [0], [0], [1], [0, 0, 1, 1], [], []>} : vector<49x76xbf16>, vector<76x256xbf16>, vector<49x256xf32> -> vector<49x256xf32>
    %c0_5 = arith.constant 0 : index
    %c0_6 = arith.constant 0 : index
    %17 = vector.load %arg4[%c0_5, %c0_6] : memref<49x76xbf16, #tpu.memory_space<vmem>>, vector<49x76xbf16>
    %cst_7 = arith.constant dense<0.000000e+00> : vector<49x256xf32>
    %18 = tpu.matmul %17, %14, %cst_7 {dimension_numbers = #tpu.dot_dimension_numbers<[1], [0], [0], [1], [0, 0, 1, 1], [], []>} : vector<49x76xbf16>, vector<76x256xbf16>, vector<49x256xf32> -> vector<49x256xf32>
    %c0_8 = arith.constant 0 : index
    %c0_9 = arith.constant 0 : index
    %19 = vector.load %arg5[%c0_8, %c0_9] : memref<49x24xbf16, #tpu.memory_space<vmem>>, vector<49x24xbf16>
    %c0_10 = arith.constant 0 : index
    %c0_11 = arith.constant 0 : index
    %20 = vector.load %arg2[%c0_10, %c0_11] : memref<24x256xf32, #tpu.memory_space<vmem>>, vector<24x256xf32>
    %21 = arith.truncf %20 : vector<24x256xf32> to vector<24x256xbf16>
    %cst_12 = arith.constant dense<0.000000e+00> : vector<49x256xf32>
    %22 = tpu.matmul %19, %21, %cst_12 {dimension_numbers = #tpu.dot_dimension_numbers<[1], [0], [0], [1], [0, 0, 1, 1], [], []>} : vector<49x24xbf16>, vector<24x256xbf16>, vector<49x256xf32> -> vector<49x256xf32>
    %23 = vector.broadcast %12 : vector<1x256xf32> to vector<49x256xf32>
    %24 = arith.mulf %23, %16 : vector<49x256xf32>
    %25 = vector.broadcast %13 : vector<1x256xf32> to vector<49x256xf32>
    %26 = arith.mulf %25, %18 : vector<49x256xf32>
    %27 = arith.addf %24, %26 : vector<49x256xf32>
    %28 = arith.addf %27, %22 : vector<49x256xf32>
    %c0_13 = arith.constant 0 : index
    %c0_14 = arith.constant 0 : index
    %29 = vector.load %arg6[%c0_13, %c0_14] : memref<49x1xf32, #tpu.memory_space<vmem>>, vector<49x1xf32>
    %30 = vector.broadcast %29 : vector<49x1xf32> to vector<49x256xf32>
    %31 = arith.addf %28, %30 : vector<49x256xf32>
    %cst_15 = arith.constant 0.000000e+00 : f32
    %32 = vector.broadcast %cst_15 : f32 to vector<49x256xf32>
    %33 = arith.maximumf %31, %32 : vector<49x256xf32>
    %c0_16 = arith.constant 0 : index
    %c0_17 = arith.constant 0 : index
    %34 = vector.load %arg7[%c0_16, %c0_17] : memref<24x49xbf16, #tpu.memory_space<vmem>>, vector<24x49xbf16>
    %35 = arith.truncf %33 : vector<49x256xf32> to vector<49x256xbf16>
    %cst_18 = arith.constant dense<0.000000e+00> : vector<24x256xf32>
    %36 = tpu.matmul %34, %35, %cst_18 {dimension_numbers = #tpu.dot_dimension_numbers<[1], [0], [0], [1], [0, 0, 1, 1], [], []>} : vector<24x49xbf16>, vector<49x256xbf16>, vector<24x256xf32> -> vector<24x256xf32>
    %c0_19 = arith.constant 0 : index
    %c0_20 = arith.constant 0 : index
    %37 = vector.load %arg8[%c0_19, %c0_20] : memref<24x1xf32, #tpu.memory_space<vmem>>, vector<24x1xf32>
    %38 = vector.broadcast %37 : vector<24x1xf32> to vector<24x256xf32>
    %39 = arith.addf %36, %38 : vector<24x256xf32>
    %cst_21 = arith.constant 0.000000e+00 : f32
    %40 = vector.broadcast %cst_21 : f32 to vector<24x256xf32>
    %41 = arith.maximumf %39, %40 : vector<24x256xf32>
    %c0_22 = arith.constant 0 : index
    %c0_23 = arith.constant 0 : index
    %42 = vector.load %arg9[%c0_22, %c0_23] : memref<1x24xbf16, #tpu.memory_space<vmem>>, vector<1x24xbf16>
    %43 = arith.truncf %41 : vector<24x256xf32> to vector<24x256xbf16>
    %cst_24 = arith.constant dense<0.000000e+00> : vector<1x256xf32>
    %44 = tpu.matmul %42, %43, %cst_24 {dimension_numbers = #tpu.dot_dimension_numbers<[1], [0], [0], [1], [0, 0, 1, 1], [], []>} : vector<1x24xbf16>, vector<24x256xbf16>, vector<1x256xf32> -> vector<1x256xf32>
    %c0_25 = arith.constant 0 : index
    %c0_26 = arith.constant 0 : index
    %45 = vector.load %arg10[%c0_25, %c0_26] : memref<1x1xf32, #tpu.memory_space<vmem>>, vector<1x1xf32>
    %46 = vector.broadcast %45 : vector<1x1xf32> to vector<1x256xf32>
    %47 = arith.addf %44, %46 : vector<1x256xf32>
    %cst_27 = arith.constant 0.000000e+00 : f32
    %48 = vector.broadcast %cst_27 : f32 to vector<1x256xf32>
    %49 = arith.subf %48, %47 : vector<1x256xf32>
    %50 = math.exp %49 : vector<1x256xf32>
    %cst_28 = arith.constant 1.000000e+00 : f32
    %51 = vector.broadcast %cst_28 : f32 to vector<1x256xf32>
    %52 = arith.addf %51, %50 : vector<1x256xf32>
    %cst_29 = arith.constant 1.000000e+00 : f32
    %53 = vector.broadcast %cst_29 : f32 to vector<1x256xf32>
    %54 = arith.divf %53, %52 : vector<1x256xf32>
    %c0_30 = arith.constant 0 : index
    %c0_31 = arith.constant 0 : index
    %55 = vector.load %arg11[%c0_30, %c0_31] : memref<1x256xf32, #tpu.memory_space<vmem>>, vector<1x256xf32>
    tpu.vector_store %arg11[%c0_30, %c0_31], %54 {strides = array<i32>} : memref<1x256xf32, #tpu.memory_space<vmem>>, vector<1x256xf32>,
    return
  }
  func.func @transform_0(%arg0: i32) -> (i32, i32) {
    %c0_i32 = arith.constant 0 : i32
    %c0_i32_0 = arith.constant 0 : i32
    return %c0_i32, %arg0 : i32, i32
  }
  func.func @transform_1(%arg0: i32) -> (i32, i32) {
    %c0_i32 = arith.constant 0 : i32
    %c0_i32_0 = arith.constant 0 : i32
    return %c0_i32, %arg0 : i32, i32
  }
  func.func @transform_2(%arg0: i32) -> (i32, i32) {
    %c0_i32 = arith.constant 0 : i32
    %c0_i32_0 = arith.constant 0 : i32
    %c0_i32_1 = arith.constant 0 : i32
    return %c0_i32, %c0_i32_0 : i32, i32
  }
  func.func @transform_3(%arg0: i32) -> (i32, i32) {
    %c0_i32 = arith.constant 0 : i32
    %c0_i32_0 = arith.constant 0 : i32
    %c0_i32_1 = arith.constant 0 : i32
    return %c0_i32, %c0_i32_0 : i32, i32
  }
  func.func @transform_4(%arg0: i32) -> (i32, i32) {
    %c0_i32 = arith.constant 0 : i32
    %c0_i32_0 = arith.constant 0 : i32
    %c0_i32_1 = arith.constant 0 : i32
    return %c0_i32, %c0_i32_0 : i32, i32
  }
  func.func @transform_5(%arg0: i32) -> (i32, i32) {
    %c0_i32 = arith.constant 0 : i32
    %c0_i32_0 = arith.constant 0 : i32
    %c0_i32_1 = arith.constant 0 : i32
    return %c0_i32, %c0_i32_0 : i32, i32
  }
  func.func @transform_6(%arg0: i32) -> (i32, i32) {
    %c0_i32 = arith.constant 0 : i32
    %c0_i32_0 = arith.constant 0 : i32
    %c0_i32_1 = arith.constant 0 : i32
    return %c0_i32, %c0_i32_0 : i32, i32
  }
  func.func @transform_7(%arg0: i32) -> (i32, i32) {
    %c0_i32 = arith.constant 0 : i32
    %c0_i32_0 = arith.constant 0 : i32
    %c0_i32_1 = arith.constant 0 : i32
    return %c0_i32, %c0_i32_0 : i32, i32
  }
  func.func @transform_8(%arg0: i32) -> (i32, i32) {
    %c0_i32 = arith.constant 0 : i32
    %c0_i32_0 = arith.constant 0 : i32
    %c0_i32_1 = arith.constant 0 : i32
    return %c0_i32, %c0_i32_0 : i32, i32
  }
  func.func @transform_9(%arg0: i32) -> (i32, i32) {
    %c0_i32 = arith.constant 0 : i32
    %c0_i32_0 = arith.constant 0 : i32
    %c0_i32_1 = arith.constant 0 : i32
    return %c0_i32, %c0_i32_0 : i32, i32
  }
  func.func @transform_10(%arg0: i32) -> (i32, i32) {
    %c0_i32 = arith.constant 0 : i32
    %c0_i32_0 = arith.constant 0 : i32
    return %c0_i32, %arg0 : i32, i32
  }
}

</mosaic_0001>

<llo_original>
// kernel: tpu_custom_call.1
$region0: #{tpu_custom_call.1}
  #allocation0 [shape = 'u32[]', space=smem, size = 0x4, offset = 0x4, fixed_abs, tag = 'smem constant byte address 0x4 - core index']
  #allocation1 [shape = 'u32[144,128]{1,0:T(1,128)}', space=vmem, size = 0x12000, scoped, tag = 'internal scratch']
  #allocation2 [shape = 'f32[1,1]{1,0:T(1,128)S(1)}', space=vmem, size = 0x200, scoped, tag = 'scoped memory for tpu_custom_call.1']
  %s0 = inlined_call_operand.hbm [shape: f32[76,512], index: 0, kind: input, shape index: {}]
  %s1 = inlined_call_operand.vmem [shape: f32[24,512], index: 1, kind: input, shape index: {}]
  %s2 = inlined_call_operand.vmem [shape: bf16[49,76], index: 2, kind: input, shape index: {}]
  %s3 = inlined_call_operand.hbm [shape: bf16[49,76], index: 3, kind: input, shape index: {}]
  %s4 = inlined_call_operand.vmem [shape: bf16[49,24], index: 4, kind: input, shape index: {}]
  %s5 = inlined_call_operand.vmem [shape: f32[49,1], index: 5, kind: input, shape index: {}]
  %s6 = inlined_call_operand.vmem [shape: bf16[24,49], index: 6, kind: input, shape index: {}]
  %s7 = inlined_call_operand.vmem [shape: f32[24,1], index: 7, kind: input, shape index: {}]
  %s8 = inlined_call_operand.vmem [shape: bf16[1,24], index: 8, kind: input, shape index: {}]
  %s9 = inlined_call_operand.<no memory space> [shape: f32[1,1], index: 9, kind: input, shape index: {}]
  %s10 = inlined_call_operand.hbm [shape: f32[1,512], index: 10, kind: output, shape index: {}]
  %s11 = sld [smem:[#allocation0]]
  $region104: #{tpu_custom_call.1} parent=0
    _
  %s13 = ssub.s32 1, %s11
  %s14 = scalar_select 0, %s13, %s11
  %v15 = vstv %s9
  %16 = vst [vmem:[#allocation2] sm:$0x1] %v15
  $region1: #{tpu_custom_call.1} parent=0
    #allocation3 [shape = 'u8[163840]{0}', space=vmem, size = 0x28000, scoped, tag = 'input window, operand 0']
    #allocation4 [shape = 's32[2]{0}', space=sflag, size = 0x8, scoped, tag = 'scoped memory for tpu_custom_call.1']
    #allocation5 [shape = 's32[2]{0}', space=sflag, size = 0x8, scoped, tag = 'scoped memory for tpu_custom_call.1']
    #allocation6 [shape = 'u8[49152]{0}', space=vmem, size = 0xc000, scoped, tag = 'input window, operand 1']
    #allocation7 [shape = 'u8[14336]{0}', space=vmem, size = 0x3800, scoped, tag = 'input window, operand 3, single buffered']
    #allocation8 [shape = 's32[1]{0}', space=sflag, size = 0x4, scoped, tag = 'scoped memory for tpu_custom_call.1']
    #allocation9 [shape = 'u8[2048]{0}', space=vmem, size = 0x800, scoped, tag = 'output window, operand 0']
    %17 = vsyncpa [#allocation4], 0
    %s18 = scalar_lea.sflag [#allocation4], 1
    %19 = vsyncpa %s18, 0
    %20 = vsyncpa [#allocation8], 0
    %21 = vsyncpa [#allocation5], 0
    %s22 = scalar_lea.sflag [#allocation5], 1
    %23 = vsyncpa %s22, 0
    loop: start=0, step=1, limit=4
    $region2: #{tpu_custom_call.1} parent=1 // loop_pre_header
      _
    $region3: #{tpu_custom_call.1} parent=1 // loop_header
      %s25 = sphi 0, %s29
      %p26 = scmp.ge.s32.totalorder %s25, 4
      %s35 = sphi 0, %s37
      %s38 = sphi 0, %s35
      %s39 = sphi 0, %s38
      %s55 = sphi 0, %s39
      %s61 = sphi 0, %s63
      %s64 = sphi 0, %s61
      %s65 = sphi 0, %s64
      %s81 = sphi 0, %s65
      %s85 = sphi 0, %s85
      %s87 = sphi 0, %s85
      %s88 = sphi 0, %s87
      %s102 = sphi 0, %s88
      %s106 = sphi 0, %s106
      %s108 = sphi 0, %s106
      %s109 = sphi 0, %s108
      %s123 = sphi 0, %s109
      %s127 = sphi 0, %s127
      %s129 = sphi 0, %s127
      %s130 = sphi 0, %s129
      %s144 = sphi 0, %s130
      %s148 = sphi 0, %s148
      %s150 = sphi 0, %s148
      %s151 = sphi 0, %s150
      %s165 = sphi 0, %s151
      %s169 = sphi 0, %s169
      %s171 = sphi 0, %s169
      %s172 = sphi 0, %s171
      %s186 = sphi 0, %s172
      %s190 = sphi 0, %s190
      %s192 = sphi 0, %s190
      %s193 = sphi 0, %s192
      %s207 = sphi 0, %s193
      %s211 = sphi 0, %s211
      %s213 = sphi 0, %s211
      %s214 = sphi 0, %s213
      %s228 = sphi 0, %s214
      %s232 = sphi 0, %s232
      %s234 = sphi 0, %s232
      %s235 = sphi 0, %s234
      %s249 = sphi 0, %s235
      %s255 = sphi 0, %s257
      %s258 = sphi 0, %s255
      %s259 = sphi 0, %s258
      %s275 = sphi 0, %s259
    $region4: #{tpu_custom_call.1} parent=1 // loop_header_branch
      %28 = sbr.rel (%p26) target = $region8
    $region5: #{tpu_custom_call.1} parent=1 // loop_body
      %s30 = ssub.s32 %s25, 1
      %s31 = ssub.s32 %s25, 2
      %s32 = sadd.s32 %s25, 1
      %s33 = ssub.s32 %s25, %s32
      %p34 = scmp.eq.s32.totalorder %s33, 0
      %s36 = sadd.s32 %s35, 1
      %s37 = scalar_select %p34, %s35, %s36
      %p40 = pneg %p34
      %p41 = scmp.eq.s32.totalorder %s25, 1
      %p42 = por %p40, %p41
      %p43 = scmp.ne.s32.totalorder %s35, %s38
      %p44 = scmp.eq.s32.totalorder %s25, 0
      %p45 = por %p43, %p44
      %p46 = scmp.ne.s32.totalorder %s35, %s38
      %p47 = scmp.eq.s32.totalorder %s30, 1
      %p48 = por %p46, %p47
      %p49 = scmp.ne.s32.totalorder %s38, %s39
      %p50 = scmp.eq.s32.totalorder %s30, 0
      %p51 = por %p49, %p50
      %p52 = scmp.ne.s32.totalorder %s38, %s39
      %p53 = scmp.eq.s32.totalorder %s31, 1
      %p54 = por %p52, %p53
      %p56 = scmp.ne.s32.totalorder %s39, %s55
      %p57 = scmp.eq.s32.totalorder %s31, 0
      %p58 = por %p56, %p57
      %s59 = ssub.s32 %s25, %s32
      %p60 = scmp.eq.s32.totalorder %s59, 0
      %s62 = sadd.s32 %s61, 1
      %s63 = scalar_select %p60, %s61, %s62
      %p66 = pneg %p60
      %p67 = scmp.eq.s32.totalorder %s25, 1
      %p68 = por %p66, %p67
      %p69 = scmp.ne.s32.totalorder %s61, %s64
      %p70 = scmp.eq.s32.totalorder %s25, 0
      %p71 = por %p69, %p70
      %p72 = scmp.ne.s32.totalorder %s61, %s64
      %p73 = scmp.eq.s32.totalorder %s30, 1
      %p74 = por %p72, %p73
      %p75 = scmp.ne.s32.totalorder %s64, %s65
      %p76 = scmp.eq.s32.totalorder %s30, 0
      %p77 = por %p75, %p76
      %p78 = scmp.ne.s32.totalorder %s64, %s65
      %p79 = scmp.eq.s32.totalorder %s31, 1
      %p80 = por %p78, %p79
      %p82 = scmp.ne.s32.totalorder %s65, %s81
      %p83 = scmp.eq.s32.totalorder %s31, 0
      %p84 = por %p82, %p83
      %s86 = sadd.s32 %s85, 1
      %p89 = scmp.eq.s32.totalorder %s25, 1
      %p90 = scmp.ne.s32.totalorder %s85, %s87
      %p91 = scmp.eq.s32.totalorder %s25, 0
      %p92 = por %p90, %p91
      %p93 = scmp.ne.s32.totalorder %s85, %s87
      %p94 = scmp.eq.s32.totalorder %s30, 1
      %p95 = por %p93, %p94
      %p96 = scmp.ne.s32.totalorder %s87, %s88
      %p97 = scmp.eq.s32.totalorder %s30, 0
      %p98 = por %p96, %p97
      %p99 = scmp.ne.s32.totalorder %s87, %s88
      %p100 = scmp.eq.s32.totalorder %s31, 1
      %p101 = por %p99, %p100
      %p103 = scmp.ne.s32.totalorder %s88, %s102
      %p104 = scmp.eq.s32.totalorder %s31, 0
      %p105 = por %p103, %p104
      %s107 = sadd.s32 %s106, 1
      %p110 = scmp.eq.s32.totalorder %s25, 1
      %p111 = scmp.ne.s32.totalorder %s106, %s108
      %p112 = scmp.eq.s32.totalorder %s25, 0
      %p113 = por %p111, %p112
      %p114 = scmp.ne.s32.totalorder %s106, %s108
      %p115 = scmp.eq.s32.totalorder %s30, 1
      %p116 = por %p114, %p115
      %p117 = scmp.ne.s32.totalorder %s108, %s109
      %p118 = scmp.eq.s32.totalorder %s30, 0
      %p119 = por %p117, %p118
      %p120 = scmp.ne.s32.totalorder %s108, %s109
      %p121 = scmp.eq.s32.totalorder %s31, 1
      %p122 = por %p120, %p121
      %p124 = scmp.ne.s32.totalorder %s109, %s123
      %p125 = scmp.eq.s32.totalorder %s31, 0
      %p126 = por %p124, %p125
      %s128 = sadd.s32 %s127, 1
      %p131 = scmp.eq.s32.totalorder %s25, 1
      %p132 = scmp.ne.s32.totalorder %s127, %s129
      %p133 = scmp.eq.s32.totalorder %s25, 0
      %p134 = por %p132, %p133
      %p135 = scmp.ne.s32.totalorder %s127, %s129
      %p136 = scmp.eq.s32.totalorder %s30, 1
      %p137 = por %p135, %p136
      %p138 = scmp.ne.s32.totalorder %s129, %s130
      %p139 = scmp.eq.s32.totalorder %s30, 0
      %p140 = por %p138, %p139
      %p141 = scmp.ne.s32.totalorder %s129, %s130
      %p142 = scmp.eq.s32.totalorder %s31, 1
      %p143 = por %p141, %p142
      %p145 = scmp.ne.s32.totalorder %s130, %s144
      %p146 = scmp.eq.s32.totalorder %s31, 0
      %p147 = por %p145, %p146
      %s149 = sadd.s32 %s148, 1
      %p152 = scmp.eq.s32.totalorder %s25, 1
      %p153 = scmp.ne.s32.totalorder %s148, %s150
      %p154 = scmp.eq.s32.totalorder %s25, 0
      %p155 = por %p153, %p154
      %p156 = scmp.ne.s32.totalorder %s148, %s150
      %p157 = scmp.eq.s32.totalorder %s30, 1
      %p158 = por %p156, %p157
      %p159 = scmp.ne.s32.totalorder %s150, %s151
      %p160 = scmp.eq.s32.totalorder %s30, 0
      %p161 = por %p159, %p160
      %p162 = scmp.ne.s32.totalorder %s150, %s151
      %p163 = scmp.eq.s32.totalorder %s31, 1
      %p164 = por %p162, %p163
      %p166 = scmp.ne.s32.totalorder %s151, %s165
      %p167 = scmp.eq.s32.totalorder %s31, 0
      %p168 = por %p166, %p167
      %s170 = sadd.s32 %s169, 1
      %p173 = scmp.eq.s32.totalorder %s25, 1
      %p174 = scmp.ne.s32.totalorder %s169, %s171
      %p175 = scmp.eq.s32.totalorder %s25, 0
      %p176 = por %p174, %p175
      %p177 = scmp.ne.s32.totalorder %s169, %s171
      %p178 = scmp.eq.s32.totalorder %s30, 1
      %p179 = por %p177, %p178
      %p180 = scmp.ne.s32.totalorder %s171, %s172
      %p181 = scmp.eq.s32.totalorder %s30, 0
      %p182 = por %p180, %p181
      %p183 = scmp.ne.s32.totalorder %s171, %s172
      %p184 = scmp.eq.s32.totalorder %s31, 1
      %p185 = por %p183, %p184
      %p187 = scmp.ne.s32.totalorder %s172, %s186
      %p188 = scmp.eq.s32.totalorder %s31, 0
      %p189 = por %p187, %p188
      %s191 = sadd.s32 %s190, 1
      %p194 = scmp.eq.s32.totalorder %s25, 1
      %p195 = scmp.ne.s32.totalorder %s190, %s192
      %p196 = scmp.eq.s32.totalorder %s25, 0
      %p197 = por %p195, %p196
      %p198 = scmp.ne.s32.totalorder %s190, %s192
      %p199 = scmp.eq.s32.totalorder %s30, 1
      %p200 = por %p198, %p199
      %p201 = scmp.ne.s32.totalorder %s192, %s193
      %p202 = scmp.eq.s32.totalorder %s30, 0
      %p203 = por %p201, %p202
      %p204 = scmp.ne.s32.totalorder %s192, %s193
      %p205 = scmp.eq.s32.totalorder %s31, 1
      %p206 = por %p204, %p205
      %p208 = scmp.ne.s32.totalorder %s193, %s207
      %p209 = scmp.eq.s32.totalorder %s31, 0
      %p210 = por %p208, %p209
      %s212 = sadd.s32 %s211, 1
      %p215 = scmp.eq.s32.totalorder %s25, 1
      %p216 = scmp.ne.s32.totalorder %s211, %s213
      %p217 = scmp.eq.s32.totalorder %s25, 0
      %p218 = por %p216, %p217
      %p219 = scmp.ne.s32.totalorder %s211, %s213
      %p220 = scmp.eq.s32.totalorder %s30, 1
      %p221 = por %p219, %p220
      %p222 = scmp.ne.s32.totalorder %s213, %s214
      %p223 = scmp.eq.s32.totalorder %s30, 0
      %p224 = por %p222, %p223
      %p225 = scmp.ne.s32.totalorder %s213, %s214
      %p226 = scmp.eq.s32.totalorder %s31, 1
      %p227 = por %p225, %p226
      %p229 = scmp.ne.s32.totalorder %s214, %s228
      %p230 = scmp.eq.s32.totalorder %s31, 0
      %p231 = por %p229, %p230
      %s233 = sadd.s32 %s232, 1
      %p236 = scmp.eq.s32.totalorder %s25, 1
      %p237 = scmp.ne.s32.totalorder %s232, %s234
      %p238 = scmp.eq.s32.totalorder %s25, 0
      %p239 = por %p237, %p238
      %p240 = scmp.ne.s32.totalorder %s232, %s234
      %p241 = scmp.eq.s32.totalorder %s30, 1
      %p242 = por %p240, %p241
      %p243 = scmp.ne.s32.totalorder %s234, %s235
      %p244 = scmp.eq.s32.totalorder %s30, 0
      %p245 = por %p243, %p244
      %p246 = scmp.ne.s32.totalorder %s234, %s235
      %p247 = scmp.eq.s32.totalorder %s31, 1
      %p248 = por %p246, %p247
      %p250 = scmp.ne.s32.totalorder %s235, %s249
      %p251 = scmp.eq.s32.totalorder %s31, 0
      %p252 = por %p250, %p251
      %s253 = ssub.s32 %s25, %s32
      %p254 = scmp.eq.s32.totalorder %s253, 0
      %s256 = sadd.s32 %s255, 1
      %s257 = scalar_select %p254, %s255, %s256
      %p260 = pneg %p254
      %p261 = scmp.eq.s32.totalorder %s25, 1
      %p262 = por %p260, %p261
      %p263 = scmp.ne.s32.totalorder %s255, %s258
      %p264 = scmp.eq.s32.totalorder %s25, 0
      %p265 = por %p263, %p264
      %p266 = scmp.ne.s32.totalorder %s255, %s258
      %p267 = scmp.eq.s32.totalorder %s30, 1
      %p268 = por %p266, %p267
      %p269 = scmp.ne.s32.totalorder %s258, %s259
      %p270 = scmp.eq.s32.totalorder %s30, 0
      %p271 = por %p269, %p270
      %p272 = scmp.ne.s32.totalorder %s258, %s259
      %p273 = scmp.eq.s32.totalorder %s31, 1
      %p274 = por %p272, %p273
      %p276 = scmp.ne.s32.totalorder %s259, %s275
      %p277 = scmp.eq.s32.totalorder %s31, 0
      %p278 = por %p276, %p277
      %p279 = scmp.le.s32.totalorder 1, %s25
      %p280 = scmp.lt.s32.totalorder %s25, 3
      %p281 = pnand %p279, %p280
      %p282 = pneg %p281
      // Predicated region
      $region9: #{tpu_custom_call.1} parent=5 // pred_check
        _
      $region10: #{tpu_custom_call.1} parent=5 // pred_check_branch
        %284 = sbr.rel (%p281) target = $region12
      $region11: #{tpu_custom_call.1} parent=5 // pred_region
        %s285 = ssub.s32 %s25, 1
        // Predicated region
        $region13: #{tpu_custom_call.1} parent=11 // pred_check
          %p286 = pneg %p98
        $region14: #{tpu_custom_call.1} parent=11 // pred_check_branch
          %288 = sbr.rel (%p286) target = $region16
        $region15: #{tpu_custom_call.1} parent=11 // pred_region
          _
        $region16: #{tpu_custom_call.1} parent=11 // pred_fallthru
          _
        // Predicated region
        $region17: #{tpu_custom_call.1} parent=11 // pred_check
          %p289 = pneg %p119
        $region18: #{tpu_custom_call.1} parent=11 // pred_check_branch
          %291 = sbr.rel (%p289) target = $region20
        $region19: #{tpu_custom_call.1} parent=11 // pred_region
          %s293 = ssub.s32 448, 448
          %294 = vsyncadd [#allocation8], %s293
          %s295 = sshll.u32 [#allocation7], 4
          %s296 = int_to_ptr.vmem [resolvable:$true] %s295
          %301 = dma.hbm_to_vmem [thread:$0]  %s3, 448, %s296, [#allocation8], 64, 64, 4
        $region20: #{tpu_custom_call.1} parent=11 // pred_fallthru
          _
        // Predicated region
        $region21: #{tpu_custom_call.1} parent=11 // pred_check
          %p302 = pneg %p140
        $region22: #{tpu_custom_call.1} parent=11 // pred_check_branch
          %304 = sbr.rel (%p302) target = $region24
        $region23: #{tpu_custom_call.1} parent=11 // pred_region
          _
        $region24: #{tpu_custom_call.1} parent=11 // pred_fallthru
          _
        // Predicated region
        $region25: #{tpu_custom_call.1} parent=11 // pred_check
          %p305 = pneg %p161
        $region26: #{tpu_custom_call.1} parent=11 // pred_check_branch
          %307 = sbr.rel (%p305) target = $region28
        $region27: #{tpu_custom_call.1} parent=11 // pred_region
          _
        $region28: #{tpu_custom_call.1} parent=11 // pred_fallthru
          _
        // Predicated region
        $region29: #{tpu_custom_call.1} parent=11 // pred_check
          %p308 = pneg %p182
        $region30: #{tpu_custom_call.1} parent=11 // pred_check_branch
          %310 = sbr.rel (%p308) target = $region32
        $region31: #{tpu_custom_call.1} parent=11 // pred_region
          _
        $region32: #{tpu_custom_call.1} parent=11 // pred_fallthru
          _
        // Predicated region
        $region33: #{tpu_custom_call.1} parent=11 // pred_check
          %p311 = pneg %p203
        $region34: #{tpu_custom_call.1} parent=11 // pred_check_branch
          %313 = sbr.rel (%p311) target = $region36
        $region35: #{tpu_custom_call.1} parent=11 // pred_region
          _
        $region36: #{tpu_custom_call.1} parent=11 // pred_fallthru
          _
        // Predicated region
        $region37: #{tpu_custom_call.1} parent=11 // pred_check
          %p314 = pneg %p224
        $region38: #{tpu_custom_call.1} parent=11 // pred_check_branch
          %316 = sbr.rel (%p314) target = $region40
        $region39: #{tpu_custom_call.1} parent=11 // pred_region
          _
        $region40: #{tpu_custom_call.1} parent=11 // pred_fallthru
          _
        // Predicated region
        $region41: #{tpu_custom_call.1} parent=11 // pred_check
          %p317 = pneg %p245
        $region42: #{tpu_custom_call.1} parent=11 // pred_check_branch
          %319 = sbr.rel (%p317) target = $region44
        $region43: #{tpu_custom_call.1} parent=11 // pred_region
          _
        $region44: #{tpu_custom_call.1} parent=11 // pred_fallthru
          _
      $region12: #{tpu_custom_call.1} parent=5 // pred_fallthru
        _
      %p320 = scmp.lt.s32.totalorder %s25, 2
      // Predicated region
      $region45: #{tpu_custom_call.1} parent=5 // pred_check
        %p321 = pneg %p320
      $region46: #{tpu_custom_call.1} parent=5 // pred_check_branch
        %323 = sbr.rel (%p321) target = $region48
      $region47: #{tpu_custom_call.1} parent=5 // pred_region
        // Predicated region
        $region49: #{tpu_custom_call.1} parent=47 // pred_check
          %p324 = pneg %p45
        $region50: #{tpu_custom_call.1} parent=47 // pred_check_branch
          %326 = sbr.rel (%p324) target = $region52
        $region51: #{tpu_custom_call.1} parent=47 // pred_region
          %s327 = sand.u32 %s35, 1
          %s328 = scalar_lea.sflag [#allocation4], %s327
          %s329 = sand.u32 %s35, 1
          %s330 = smul.addr %s329, 160
          %s331 = scalar_lea.vmem [#allocation3], %s330
          %s332 = smul.u32 2, %s25
          %s334 = ssub.s32 2560, 2560
          %335 = vsyncadd %s328, %s334
          %s336 = smul.addr %s332, 128
          %s337 = scalar_lea.hbm %s0, %s336
          %s338 = sshll.u32 %s331, 4
          %s339 = int_to_ptr.vmem [resolvable:$true] %s338
          %344 = dma.hbm_to_vmem [thread:$0]  %s337, 2560, %s339, %s328, 512, 256, 16
        $region52: #{tpu_custom_call.1} parent=47 // pred_fallthru
          _
        // Predicated region
        $region53: #{tpu_custom_call.1} parent=47 // pred_check
          %p345 = pneg %p71
        $region54: #{tpu_custom_call.1} parent=47 // pred_check_branch
          %347 = sbr.rel (%p345) target = $region56
        $region55: #{tpu_custom_call.1} parent=47 // pred_region
          %s348 = sand.u32 %s61, 1
          %s349 = sand.u32 %s61, 1
          %s350 = smul.addr %s349, 48
          %s351 = scalar_lea.vmem [#allocation6], %s350
          %s352 = smul.u32 2, %s25
          %s353 = smul.addr %s352, 8
          %s354 = scalar_lea.vmem %s1, %s353
          // Predicated region
          $region57: #{tpu_custom_call.1} parent=55 // pred_check
            _
          $region58: #{tpu_custom_call.1} parent=55 // pred_check_branch
            %356 = sbr.rel (0) target = $region60
          $region59: #{tpu_custom_call.1} parent=55 // pred_region
            // Predicated region
            $region61: #{tpu_custom_call.1} parent=59 // pred_check
              _
            $region62: #{tpu_custom_call.1} parent=59 // pred_check_branch
              %358 = sbr.rel (0) target = $region64
            $region63: #{tpu_custom_call.1} parent=59 // pred_region
              loop: start=0, step=1, limit=1
              $region65: #{tpu_custom_call.1} parent=63 // loop_pre_header
                _
              $region66: #{tpu_custom_call.1} parent=63 // loop_header
                %s360 = sphi 0, %s364
                %p361 = scmp.ge.s32.totalorder %s360, 1
                %s365 = sphi %s354, %s354
                %s366 = sphi %s351, %s351
              $region67: #{tpu_custom_call.1} parent=63 // loop_header_branch
                %363 = sbr.rel (%p361) target = $region71
              $region68: #{tpu_custom_call.1} parent=63 // loop_body
                %v367 = vld [vmem:[%s365] sm:$0xff]
                %368 = vst [vmem:[%s366] sm:$0xff] %v367
                %v369 = vld [vmem:[%s365 + $0x8] sm:$0xff]
                %370 = vst [vmem:[%s366 + $0x8] sm:$0xff] %v369
                %v371 = vld [vmem:[%s365 + $0x20] sm:$0xff]
                %372 = vst [vmem:[%s366 + $0x10] sm:$0xff] %v371
                %v373 = vld [vmem:[%s365 + $0x28] sm:$0xff]
                %374 = vst [vmem:[%s366 + $0x18] sm:$0xff] %v373
                %v375 = vld [vmem:[%s365 + $0x40] sm:$0xff]
                %376 = vst [vmem:[%s366 + $0x20] sm:$0xff] %v375
                %v377 = vld [vmem:[%s365 + $0x48] sm:$0xff]
                %378 = vst [vmem:[%s366 + $0x28] sm:$0xff] %v377
              $region69: #{tpu_custom_call.1} parent=63 // loop_footer
                %s364 = sadd.s32 1, %s360
              $region70: #{tpu_custom_call.1} parent=63 // loop_footer_branch
                %359 = sbr.rel target = $region66
              $region71: #{tpu_custom_call.1} parent=63 // loop_exit
                _
            $region64: #{tpu_custom_call.1} parent=59 // pred_fallthru
              _
            // Predicated region
            $region72: #{tpu_custom_call.1} parent=59 // pred_check
              _
            $region73: #{tpu_custom_call.1} parent=59 // pred_check_branch
              %380 = sbr.rel target = $region75
            $region74: #{tpu_custom_call.1} parent=59 // pred_region
              _
            $region75: #{tpu_custom_call.1} parent=59 // pred_fallthru
              _
          $region60: #{tpu_custom_call.1} parent=55 // pred_fallthru
            _
          %381 = vnop
        $region56: #{tpu_custom_call.1} parent=47 // pred_fallthru
          _
      $region48: #{tpu_custom_call.1} parent=5 // pred_fallthru
        _
      %p382 = scmp.le.s32.totalorder 1, %s25
      %p383 = scmp.lt.s32.totalorder %s25, 3
      %p384 = pnand %p382, %p383
      %p385 = pneg %p384
      // Predicated region
      $region76: #{tpu_custom_call.1} parent=5 // pred_check
        _
      $region77: #{tpu_custom_call.1} parent=5 // pred_check_branch
        %387 = sbr.rel (%p384) target = $region79
      $region78: #{tpu_custom_call.1} parent=5 // pred_region
        %s388 = ssub.s32 %s25, 1
        %s389 = sand.u32 %s38, 1
        %s390 = scalar_lea.sflag [#allocation4], %s389
        %s391 = sand.u32 %s38, 1
        %s392 = smul.addr %s391, 160
        %s393 = scalar_lea.vmem [#allocation3], %s392
        // Predicated region
        $region80: #{tpu_custom_call.1} parent=78 // pred_check
          %p394 = pneg %p51
        $region81: #{tpu_custom_call.1} parent=78 // pred_check_branch
          %396 = sbr.rel (%p394) target = $region83
        $region82: #{tpu_custom_call.1} parent=78 // pred_region
          %397 = dma.done %s390, 2560
        $region83: #{tpu_custom_call.1} parent=78 // pred_fallthru
          _
        %s398 = sand.u32 %s64, 1
        %s399 = sand.u32 %s64, 1
        %s400 = smul.addr %s399, 48
        %s401 = scalar_lea.vmem [#allocation6], %s400
        // Predicated region
        $region84: #{tpu_custom_call.1} parent=78 // pred_check
          %p402 = pneg %p77
        $region85: #{tpu_custom_call.1} parent=78 // pred_check_branch
          %404 = sbr.rel (%p402) target = $region87
        $region86: #{tpu_custom_call.1} parent=78 // pred_region
          _
        $region87: #{tpu_custom_call.1} parent=78 // pred_fallthru
          _
        // Predicated region
        $region88: #{tpu_custom_call.1} parent=78 // pred_check
          %p405 = pneg %p119
        $region89: #{tpu_custom_call.1} parent=78 // pred_check_branch
          %407 = sbr.rel (%p405) target = $region91
        $region90: #{tpu_custom_call.1} parent=78 // pred_region
          %408 = dma.done [#allocation8], 448
        $region91: #{tpu_custom_call.1} parent=78 // pred_fallthru
          _
        %s409 = sand.u32 %s38, 1
        %s410 = scalar_lea.sflag [#allocation4], %s409
        %s411 = sand.u32 %s38, 1
        %s412 = smul.addr %s411, 160
        %s413 = scalar_lea.vmem [#allocation3], %s412
        %p414 = pneg %p51
        %p415 = pneg %p48
        %s416 = sand.u32 %s64, 1
        %s417 = sand.u32 %s64, 1
        %s418 = smul.addr %s417, 48
        %s419 = scalar_lea.vmem [#allocation6], %s418
        %p420 = pneg %p77
        %p421 = pneg %p74
        %p422 = pneg %p98
        %p423 = pneg %p95
        %p424 = pneg %p119
        %p425 = pneg %p116
        %p426 = pneg %p140
        %p427 = pneg %p137
        %p428 = pneg %p161
        %p429 = pneg %p158
        %p430 = pneg %p182
        %p431 = pneg %p179
        %p432 = pneg %p203
        %p433 = pneg %p200
        %p434 = pneg %p224
        %p435 = pneg %p221
        %p436 = pneg %p245
        %p437 = pneg %p242
        %p438 = pneg %p271
        %p439 = pneg %p268
        %s440 = sand.u32 %s258, 1
        %s441 = scalar_lea.sflag [#allocation5], %s440
        %s442 = sand.u32 %s258, 1
        %s443 = smul.addr %s442, 2
        %s444 = scalar_lea.vmem [#allocation9], %s443
        %s445 = smul.u32 2, %s30
        %s446 = smul.u32 2, %s30
        %s447 = smul.u32 2, %s30
        %v449 = vld [vmem:[%s393] sm:$0xff]
        %v450 = vld [vmem:[%s393 + $0x8] sm:$0xff]
        %v451 = vld [vmem:[%s393 + $0x10] sm:$0xff]
        %v452 = vld [vmem:[%s393 + $0x18] sm:$0xff]
        %v453 = vld [vmem:[%s393 + $0x20] sm:$0xff]
        %v454 = vld [vmem:[%s393 + $0x28] sm:$0xff]
        %v455 = vld [vmem:[%s393 + $0x30] sm:$0xff]
        %v456 = vld [vmem:[%s393 + $0x38] sm:$0xff]
        %v457 = vld [vmem:[%s393 + $0x40] sm:$0xff]
        %v458 = vld [vmem:[%s393 + $0x48] sm:$0xff]
        %v459 = vld [vmem:[%s393 + $0x50] sm:$0xff]
        %v460 = vld [vmem:[%s393 + $0x58] sm:$0xff]
        %v461 = vld [vmem:[%s393 + $0x60] sm:$0xff]
        %v462 = vld [vmem:[%s393 + $0x68] sm:$0xff]
        %v463 = vld [vmem:[%s393 + $0x70] sm:$0xff]
        %v464 = vld [vmem:[%s393 + $0x78] sm:$0xff]
        %v465 = vld [vmem:[%s393 + $0x80] sm:$0xff]
        %v466 = vld [vmem:[%s393 + $0x88] sm:$0xff]
        %v467 = vld [vmem:[%s393 + $0x90] sm:$0xf]
        %v468 = vld [vmem:[%s393 + $0x98] sm:$0xf]
        %v469 = vand.u32 2147483647, %v449
        %v470 = vand.u32 2147483647, %v450
        %vm471 = vcmp.lt.f32.partialorder %v469, 1e-10
        %vm472 = vcmp.lt.f32.partialorder %v470, 1e-10
        %v473 = vsel %vm471, 1e-10, %v449
        %v474 = vsel %vm472, 1e-10, %v450
        %v475 = vmul.f32 %v473, %v473
        %v476 = vmul.f32 %v474, %v474
        %v477 = vmul.f32 %v451, %v451
        %v478 = vmul.f32 %v452, %v452
        %v481 = vrot.slane %v477, 5
        %v482 = vrot.slane %v478, 5
        %v485 = vadd.f32 %v475, %v481
        %v486 = vadd.f32 %v476, %v482
        %v487 = vrsqrt.pop %v485
        %v488 = vrsqrt.pop %v486
        %v489 = vmul.f32 %v473, %v487
        %v490 = vmul.f32 %v474, %v488
        %v493 = vrot.slane %v487, 3
        %v494 = vrot.slane %v488, 3
        %v497 = vmul.f32 %v451, %v493
        %v498 = vmul.f32 %v452, %v494
        %v499 = vpack.c.bf16 %v451, %v449
        %v500 = vpack.c.bf16 %v452, %v450
        %v501 = vpack.c.bf16 %v455, %v453
        %v502 = vpack.c.bf16 %v456, %v454
        %v503 = vpack.c.bf16 %v459, %v457
        %v504 = vpack.c.bf16 %v460, %v458
        %v505 = vpack.c.bf16 %v463, %v461
        %v506 = vpack.c.bf16 %v464, %v462
        %v507 = vpack.c.bf16 %v467, %v465
        %v508 = vpack.c.bf16 %v468, %v466
        %v509 = vld [vmem:[%s2] sm:$0xf]
        %v510 = vld [vmem:[%s2 + $0x4] sm:$0xf]
        %v511 = vld [vmem:[%s2 + $0x8] sm:$0xf]
        %v512 = vld [vmem:[%s2 + $0xc] sm:$0xf]
        %v513 = vld [vmem:[%s2 + $0x10] sm:$0xf]
        %v514 = vld [vmem:[%s2 + $0x14] sm:$0xf]
        %v515 = vld [vmem:[%s2 + $0x18] sm:$0x1]
        %v523 = vunpack.c.l.b16 %v509
        %v524 = vunpack.c.l.b16 %v510
        %v525 = vunpack.c.l.b16 %v511
        %v526 = vunpack.c.l.b16 %v512
        %v527 = vunpack.c.l.b16 %v513
        %v528 = vunpack.c.l.b16 %v514
        %v529 = vunpack.c.l.b16 %v515
        %v530 = vpack.c.b16 %v524, %v523
        %v531 = vpack.c.b16 %v526, %v525
        %v532 = vpack.c.b16 %v528, %v527
        %v533 = vpack.c.b16 %v529, %v529
        %vm534 = vcmask 621568
        %v536 = vsel %vm534, %v530, 0
        %v539 = vsel %vm534, %v531, 0
        %v542 = vsel %vm534, %v532, 0
        %v545 = vsel %vm534, %v533, 0
        %vm547 = vcmask 1045504
        %v549 = vsel %vm547, %v507, 0
        %v552 = vsel %vm547, %v508, 0
        %554 = vmatprep.subr.bf16.mxu0 %v500
        %555 = vmatpush1.bf16.msra.mxu0 %v499
        %556 = vmatprep.subr.bf16.mxu0 %v502
        %557 = vmatpush1.bf16.msra.mxu0 %v501
        %558 = vmatprep.subr.bf16.mxu0 %v504
        %559 = vmatpush1.bf16.msra.mxu0 %v503
        %560 = vmatprep.subr.bf16.mxu0 %v506
        %561 = vmatpush1.bf16.msra.mxu0 %v505
        %562 = vmatprep.subr.bf16.mxu0 %v552
        %563 = vmatpush1.bf16.msra.mxu0 %v549
        %564 = vmatprep.subr.bf16.mxu0 0
        %565 = vmatpush1.bf16.msra.mxu0 0
        %566 = vmatprep.subr.bf16.mxu0 0
        %567 = vmatpush1.bf16.msra.mxu0 0
        %568 = vmatprep.subr.bf16.mxu0 0
        %569 = vmatpush1.bf16.msra.mxu0 0
        %570 = vmatprep.subr.bf16.mxu0 0
        %571 = vmatpush1.bf16.msra.mxu0 0
        %572 = vmatprep.subr.bf16.mxu0 0
        %573 = vmatpush1.bf16.msra.mxu0 0
        %574 = vmatprep.subr.bf16.mxu0 0
        %575 = vmatpush1.bf16.msra.mxu0 0
        %576 = vmatprep.subr.bf16.mxu0 0
        %577 = vmatpush1.bf16.msra.mxu0 0
        %578 = vmatprep.subr.bf16.mxu0 0
        %579 = vmatpush1.bf16.msra.mxu0 0
        %580 = vmatprep.subr.bf16.mxu0 0
        %581 = vmatpush1.bf16.msra.mxu0 0
        %582 = vmatprep.subr.bf16.mxu0 0
        %583 = vmatpush1.bf16.msra.mxu0 0
        %584 = vmatprep.subr.bf16.mxu0 0
        %585 = vmatpush1.bf16.msra.mxu0 0
        %586 = vmatprep.mubr.bf16.mxu0 0
        %587 = vmatmul.mubr.bf16.gmra.mrb[0].mxu0 %v536
        %v588 = vpop.f32.mrb[0].mxu0
        %v589 = vadd.f32 0.0, %v588
        %v590 = vpop.f32.mrb[0].mxu0
        %v591 = vadd.f32 0.0, %v590
        %v592 = vpop.f32.mrb[0].mxu0
        %v593 = vadd.f32 0.0, %v592
        %v594 = vpop.f32.mrb[0].mxu0
        %v595 = vadd.f32 0.0, %v594
        %596 = vmatprep.mubr.bf16.mxu0 0
        %597 = vmatmul.mubr.bf16.gmra.mrb[0].mxu0 %v539
        %v598 = vpop.f32.mrb[0].mxu0
        %v599 = vadd.f32 0.0, %v598
        %v600 = vpop.f32.mrb[0].mxu0
        %v601 = vadd.f32 0.0, %v600
        %v602 = vpop.f32.mrb[0].mxu0
        %v603 = vadd.f32 0.0, %v602
        %v604 = vpop.f32.mrb[0].mxu0
        %v605 = vadd.f32 0.0, %v604
        %606 = vmatprep.mubr.bf16.mxu0 0
        %607 = vmatmul.mubr.bf16.gmra.mrb[0].mxu0 %v542
        %v608 = vpop.f32.mrb[0].mxu0
        %v609 = vadd.f32 0.0, %v608
        %v610 = vpop.f32.mrb[0].mxu0
        %v611 = vadd.f32 0.0, %v610
        %v612 = vpop.f32.mrb[0].mxu0
        %v613 = vadd.f32 0.0, %v612
        %v614 = vpop.f32.mrb[0].mxu0
        %v615 = vadd.f32 0.0, %v614
        %616 = vmatprep.mubr.bf16.mxu0 0
        %617 = vmatmul.mubr.bf16.gmra.mrb[0].mxu0 %v545
        %v618 = vpop.f32.mrb[0].mxu0
        %v619 = vadd.f32 0.0, %v618
        %v620 = vpop.f32.mrb[0].mxu0
        %v621 = vadd.f32 0.0, %v620
        %v622 = vpop.f32.mrb[0].mxu0
        %v623 = vpop.f32.mrb[0].mxu0
        %624 = vdwg.mxu0
        %v625 = vld [vmem:[#allocation7] sm:$0xf]
        %v626 = vld [vmem:[#allocation7 + $0x4] sm:$0xf]
        %v627 = vld [vmem:[#allocation7 + $0x8] sm:$0xf]
        %v628 = vld [vmem:[#allocation7 + $0xc] sm:$0xf]
        %v629 = vld [vmem:[#allocation7 + $0x10] sm:$0xf]
        %v630 = vld [vmem:[#allocation7 + $0x14] sm:$0xf]
        %v631 = vld [vmem:[#allocation7 + $0x18] sm:$0x1]
        %v639 = vunpack.c.l.b16 %v625
        %v640 = vunpack.c.l.b16 %v626
        %v641 = vunpack.c.l.b16 %v627
        %v642 = vunpack.c.l.b16 %v628
        %v643 = vunpack.c.l.b16 %v629
        %v644 = vunpack.c.l.b16 %v630
        %v645 = vunpack.c.l.b16 %v631
        %v646 = vpack.c.b16 %v640, %v639
        %v647 = vpack.c.b16 %v642, %v641
        %v648 = vpack.c.b16 %v644, %v643
        %v649 = vpack.c.b16 %v645, %v645
        %v651 = vsel %vm534, %v646, 0
        %v654 = vsel %vm534, %v647, 0
        %v657 = vsel %vm534, %v648, 0
        %v660 = vsel %vm534, %v649, 0
        %662 = vmatprep.subr.bf16.mxu0 %v500
        %663 = vmatpush1.bf16.msra.mxu0 %v499
        %664 = vmatprep.subr.bf16.mxu0 %v502
        %665 = vmatpush1.bf16.msra.mxu0 %v501
        %666 = vmatprep.subr.bf16.mxu0 %v504
        %667 = vmatpush1.bf16.msra.mxu0 %v503
        %668 = vmatprep.subr.bf16.mxu0 %v506
        %669 = vmatpush1.bf16.msra.mxu0 %v505
        %670 = vmatprep.subr.bf16.mxu0 %v552
        %671 = vmatpush1.bf16.msra.mxu0 %v549
        %672 = vmatprep.subr.bf16.mxu0 0
        %673 = vmatpush1.bf16.msra.mxu0 0
        %674 = vmatprep.subr.bf16.mxu0 0
        %675 = vmatpush1.bf16.msra.mxu0 0
        %676 = vmatprep.subr.bf16.mxu0 0
        %677 = vmatpush1.bf16.msra.mxu0 0
        %678 = vmatprep.subr.bf16.mxu0 0
        %679 = vmatpush1.bf16.msra.mxu0 0
        %680 = vmatprep.subr.bf16.mxu0 0
        %681 = vmatpush1.bf16.msra.mxu0 0
        %682 = vmatprep.subr.bf16.mxu0 0
        %683 = vmatpush1.bf16.msra.mxu0 0
        %684 = vmatprep.subr.bf16.mxu0 0
        %685 = vmatpush1.bf16.msra.mxu0 0
        %686 = vmatprep.subr.bf16.mxu0 0
        %687 = vmatpush1.bf16.msra.mxu0 0
        %688 = vmatprep.subr.bf16.mxu0 0
        %689 = vmatpush1.bf16.msra.mxu0 0
        %690 = vmatprep.subr.bf16.mxu0 0
        %691 = vmatpush1.bf16.msra.mxu0 0
        %692 = vmatprep.subr.bf16.mxu0 0
        %693 = vmatpush1.bf16.msra.mxu0 0
        %694 = vmatprep.mubr.bf16.mxu0 0
        %695 = vmatmul.mubr.bf16.gmra.mrb[0].mxu0 %v651
        %v696 = vpop.f32.mrb[0].mxu0
        %v697 = vadd.f32 0.0, %v696
        %v698 = vpop.f32.mrb[0].mxu0
        %v699 = vadd.f32 0.0, %v698
        %v700 = vpop.f32.mrb[0].mxu0
        %v701 = vadd.f32 0.0, %v700
        %v702 = vpop.f32.mrb[0].mxu0
        %v703 = vadd.f32 0.0, %v702
        %704 = vmatprep.mubr.bf16.mxu0 0
        %705 = vmatmul.mubr.bf16.gmra.mrb[0].mxu0 %v654
        %v706 = vpop.f32.mrb[0].mxu0
        %v707 = vadd.f32 0.0, %v706
        %v708 = vpop.f32.mrb[0].mxu0
        %v709 = vadd.f32 0.0, %v708
        %v710 = vpop.f32.mrb[0].mxu0
        %v711 = vadd.f32 0.0, %v710
        %v712 = vpop.f32.mrb[0].mxu0
        %v713 = vadd.f32 0.0, %v712
        %714 = vmatprep.mubr.bf16.mxu0 0
        %715 = vmatmul.mubr.bf16.gmra.mrb[0].mxu0 %v657
        %v716 = vpop.f32.mrb[0].mxu0
        %v717 = vadd.f32 0.0, %v716
        %v718 = vpop.f32.mrb[0].mxu0
        %v719 = vadd.f32 0.0, %v718
        %v720 = vpop.f32.mrb[0].mxu0
        %v721 = vadd.f32 0.0, %v720
        %v722 = vpop.f32.mrb[0].mxu0
        %v723 = vadd.f32 0.0, %v722
        %724 = vmatprep.mubr.bf16.mxu0 0
        %725 = vmatmul.mubr.bf16.gmra.mrb[0].mxu0 %v660
        %v726 = vpop.f32.mrb[0].mxu0
        %v727 = vadd.f32 0.0, %v726
        %v728 = vpop.f32.mrb[0].mxu0
        %v729 = vadd.f32 0.0, %v728
        %v730 = vpop.f32.mrb[0].mxu0
        %v731 = vpop.f32.mrb[0].mxu0
        %732 = vdwg.mxu0
        %v733 = vld [vmem:[%s4] sm:$0xf]
        %v734 = vld [vmem:[%s4 + $0x4] sm:$0xf]
        %v735 = vld [vmem:[%s4 + $0x8] sm:$0xf]
        %v736 = vld [vmem:[%s4 + $0xc] sm:$0xf]
        %v737 = vld [vmem:[%s4 + $0x10] sm:$0xf]
        %v738 = vld [vmem:[%s4 + $0x14] sm:$0xf]
        %v739 = vld [vmem:[%s4 + $0x18] sm:$0x1]
        %v740 = vld [vmem:[%s401] sm:$0xff]
        %v741 = vld [vmem:[%s401 + $0x8] sm:$0xff]
        %v742 = vld [vmem:[%s401 + $0x10] sm:$0xff]
        %v743 = vld [vmem:[%s401 + $0x18] sm:$0xff]
        %v744 = vld [vmem:[%s401 + $0x20] sm:$0xff]
        %v745 = vld [vmem:[%s401 + $0x28] sm:$0xff]
        %v746 = vpack.c.bf16 %v742, %v740
        %v747 = vpack.c.bf16 %v743, %v741
        %v748 = vpack.c.bf16 %v744, %v744
        %v749 = vpack.c.bf16 %v745, %v745
        %v757 = vunpack.c.l.b16 %v733
        %v758 = vunpack.c.l.b16 %v734
        %v759 = vunpack.c.l.b16 %v735
        %v760 = vunpack.c.l.b16 %v736
        %v761 = vunpack.c.l.b16 %v737
        %v762 = vunpack.c.l.b16 %v738
        %v763 = vunpack.c.l.b16 %v739
        %v764 = vpack.c.b16 %v758, %v757
        %v765 = vpack.c.b16 %v760, %v759
        %v766 = vpack.c.b16 %v762, %v761
        %v767 = vpack.c.b16 %v763, %v763
        %vm768 = vcmask 195584
        %v770 = vsel %vm768, %v764, 0
        %v773 = vsel %vm768, %v765, 0
        %v776 = vsel %vm768, %v766, 0
        %v779 = vsel %vm768, %v767, 0
        %vm781 = vcmask 1043456
        %v783 = vsel %vm781, %v748, 0
        %v786 = vsel %vm781, %v749, 0
        %788 = vmatprep.subr.bf16.mxu0 %v747
        %789 = vmatpush1.bf16.msra.mxu0 %v746
        %790 = vmatprep.subr.bf16.mxu0 %v786
        %791 = vmatpush1.bf16.msra.mxu0 %v783
        %792 = vmatprep.subr.bf16.mxu0 0
        %793 = vmatpush1.bf16.msra.mxu0 0
        %794 = vmatprep.subr.bf16.mxu0 0
        %795 = vmatpush1.bf16.msra.mxu0 0
        %796 = vmatprep.subr.bf16.mxu0 0
        %797 = vmatpush1.bf16.msra.mxu0 0
        %798 = vmatprep.subr.bf16.mxu0 0
        %799 = vmatpush1.bf16.msra.mxu0 0
        %800 = vmatprep.subr.bf16.mxu0 0
        %801 = vmatpush1.bf16.msra.mxu0 0
        %802 = vmatprep.subr.bf16.mxu0 0
        %803 = vmatpush1.bf16.msra.mxu0 0
        %804 = vmatprep.subr.bf16.mxu0 0
        %805 = vmatpush1.bf16.msra.mxu0 0
        %806 = vmatprep.subr.bf16.mxu0 0
        %807 = vmatpush1.bf16.msra.mxu0 0
        %808 = vmatprep.subr.bf16.mxu0 0
        %809 = vmatpush1.bf16.msra.mxu0 0
        %810 = vmatprep.subr.bf16.mxu0 0
        %811 = vmatpush1.bf16.msra.mxu0 0
        %812 = vmatprep.subr.bf16.mxu0 0
        %813 = vmatpush1.bf16.msra.mxu0 0
        %814 = vmatprep.subr.bf16.mxu0 0
        %815 = vmatpush1.bf16.msra.mxu0 0
        %816 = vmatprep.subr.bf16.mxu0 0
        %817 = vmatpush1.bf16.msra.mxu0 0
        %818 = vmatprep.subr.bf16.mxu0 0
        %819 = vmatpush1.bf16.msra.mxu0 0
        %820 = vmatprep.mubr.bf16.mxu0 0
        %821 = vmatmul.mubr.bf16.gmra.mrb[0].mxu0 %v770
        %v822 = vpop.f32.mrb[0].mxu0
        %v823 = vadd.f32 0.0, %v822
        %v824 = vpop.f32.mrb[0].mxu0
        %v825 = vadd.f32 0.0, %v824
        %v826 = vpop.f32.mrb[0].mxu0
        %v827 = vadd.f32 0.0, %v826
        %v828 = vpop.f32.mrb[0].mxu0
        %v829 = vadd.f32 0.0, %v828
        %830 = vmatprep.mubr.bf16.mxu0 0
        %831 = vmatmul.mubr.bf16.gmra.mrb[0].mxu0 %v773
        %v832 = vpop.f32.mrb[0].mxu0
        %v833 = vadd.f32 0.0, %v832
        %v834 = vpop.f32.mrb[0].mxu0
        %v835 = vadd.f32 0.0, %v834
        %v836 = vpop.f32.mrb[0].mxu0
        %v837 = vadd.f32 0.0, %v836
        %v838 = vpop.f32.mrb[0].mxu0
        %v839 = vadd.f32 0.0, %v838
        %840 = vmatprep.mubr.bf16.mxu0 0
        %841 = vmatmul.mubr.bf16.gmra.mrb[0].mxu0 %v776
        %v842 = vpop.f32.mrb[0].mxu0
        %v843 = vadd.f32 0.0, %v842
        %v844 = vpop.f32.mrb[0].mxu0
        %v845 = vadd.f32 0.0, %v844
        %v846 = vpop.f32.mrb[0].mxu0
        %v847 = vadd.f32 0.0, %v846
        %v848 = vpop.f32.mrb[0].mxu0
        %v849 = vadd.f32 0.0, %v848
        %850 = vmatprep.mubr.bf16.mxu0 0
        %851 = vmatmul.mubr.bf16.gmra.mrb[0].mxu0 %v779
        %v852 = vpop.f32.mrb[0].mxu0
        %v853 = vadd.f32 0.0, %v852
        %v854 = vpop.f32.mrb[0].mxu0
        %v855 = vadd.f32 0.0, %v854
        %v856 = vpop.f32.mrb[0].mxu0
        %v857 = vpop.f32.mrb[0].mxu0
        %858 = vdwg.mxu0
        %v859 = vlaneseq
        %v860 = vshrl.u32 %v859, 7
        %v861 = vsub.s32 1, %v860
        %v862 = vrot.slane %v489, %v861
        %v863 = vlaneseq
        %v864 = vshrl.u32 %v863, 7
        %v865 = vsub.s32 1, %v864
        %v866 = vrot.slane %v490, %v865
        %v867 = vmul.f32 %v862, %v589
        %v868 = vmul.f32 %v866, %v591
        %v869 = vmul.f32 %v862, %v593
        %v870 = vmul.f32 %v866, %v595
        %v871 = vmul.f32 %v862, %v599
        %v872 = vmul.f32 %v866, %v601
        %v873 = vmul.f32 %v862, %v603
        %v874 = vmul.f32 %v866, %v605
        %v875 = vmul.f32 %v862, %v609
        %v876 = vmul.f32 %v866, %v611
        %v877 = vmul.f32 %v862, %v613
        %v878 = vmul.f32 %v866, %v615
        %v879 = vmul.f32 %v862, %v619
        %v880 = vmul.f32 %v866, %v621
        %v881 = vlaneseq
        %v882 = vshrl.u32 %v881, 7
        %v883 = vsub.s32 6, %v882
        %v884 = vrot.slane %v497, %v883
        %v885 = vlaneseq
        %v886 = vshrl.u32 %v885, 7
        %v887 = vsub.s32 6, %v886
        %v888 = vrot.slane %v498, %v887
        %v889 = vmul.f32 %v884, %v697
        %v890 = vmul.f32 %v888, %v699
        %v891 = vmul.f32 %v884, %v701
        %v892 = vmul.f32 %v888, %v703
        %v893 = vmul.f32 %v884, %v707
        %v894 = vmul.f32 %v888, %v709
        %v895 = vmul.f32 %v884, %v711
        %v896 = vmul.f32 %v888, %v713
        %v897 = vmul.f32 %v884, %v717
        %v898 = vmul.f32 %v888, %v719
        %v899 = vmul.f32 %v884, %v721
        %v900 = vmul.f32 %v888, %v723
        %v901 = vmul.f32 %v884, %v727
        %v902 = vmul.f32 %v888, %v729
        %v903 = vadd.f32 %v867, %v889
        %v904 = vadd.f32 %v868, %v890
        %v905 = vadd.f32 %v869, %v891
        %v906 = vadd.f32 %v870, %v892
        %v907 = vadd.f32 %v871, %v893
        %v908 = vadd.f32 %v872, %v894
        %v909 = vadd.f32 %v873, %v895
        %v910 = vadd.f32 %v874, %v896
        %v911 = vadd.f32 %v875, %v897
        %v912 = vadd.f32 %v876, %v898
        %v913 = vadd.f32 %v877, %v899
        %v914 = vadd.f32 %v878, %v900
        %v915 = vadd.f32 %v879, %v901
        %v916 = vadd.f32 %v880, %v902
        %v917 = vadd.f32 %v903, %v823
        %v918 = vadd.f32 %v904, %v825
        %v919 = vadd.f32 %v905, %v827
        %v920 = vadd.f32 %v906, %v829
        %v921 = vadd.f32 %v907, %v833
        %v922 = vadd.f32 %v908, %v835
        %v923 = vadd.f32 %v909, %v837
        %v924 = vadd.f32 %v910, %v839
        %v925 = vadd.f32 %v911, %v843
        %v926 = vadd.f32 %v912, %v845
        %v927 = vadd.f32 %v913, %v847
        %v928 = vadd.f32 %v914, %v849
        %v929 = vadd.f32 %v915, %v853
        %v930 = vadd.f32 %v916, %v855
        %v931 = vld [vmem:[%s5] sm:$0xff]
        %v932 = vld [vmem:[%s5 + $0x8] sm:$0xff]
        %v933 = vld [vmem:[%s5 + $0x10] sm:$0xff]
        %v934 = vld [vmem:[%s5 + $0x18] sm:$0xff]
        %v935 = vld [vmem:[%s5 + $0x20] sm:$0xff]
        %v936 = vld [vmem:[%s5 + $0x28] sm:$0xff]
        %v937 = vld [vmem:[%s5 + $0x30] sm:$0x1]
        %939 = vset.pattern.permute.xlu0 0
        %940 = vperm.xlu0 %939, %v931
        %v941 = vpop.permute.xlu0 %940
        %944 = vset.pattern.permute.xlu0 0
        %945 = vperm.xlu0 %944, %v932
        %v946 = vpop.permute.xlu0 %945
        %949 = vset.pattern.permute.xlu0 0
        %950 = vperm.xlu0 %949, %v933
        %v951 = vpop.permute.xlu0 %950
        %954 = vset.pattern.permute.xlu0 0
        %955 = vperm.xlu0 %954, %v934
        %v956 = vpop.permute.xlu0 %955
        %959 = vset.pattern.permute.xlu0 0
        %960 = vperm.xlu0 %959, %v935
        %v961 = vpop.permute.xlu0 %960
        %964 = vset.pattern.permute.xlu0 0
        %965 = vperm.xlu0 %964, %v936
        %v966 = vpop.permute.xlu0 %965
        %969 = vset.pattern.permute.xlu0 0
        %970 = vperm.xlu0 %969, %v937
        %v971 = vpop.permute.xlu0 %970
        %v973 = vadd.f32 %v917, %v941
        %v974 = vadd.f32 %v918, %v941
        %v975 = vadd.f32 %v919, %v946
        %v976 = vadd.f32 %v920, %v946
        %v977 = vadd.f32 %v921, %v951
        %v978 = vadd.f32 %v922, %v951
        %v979 = vadd.f32 %v923, %v956
        %v980 = vadd.f32 %v924, %v956
        %v981 = vadd.f32 %v925, %v961
        %v982 = vadd.f32 %v926, %v961
        %v983 = vadd.f32 %v927, %v966
        %v984 = vadd.f32 %v928, %v966
        %v985 = vadd.f32 %v929, %v971
        %v986 = vadd.f32 %v930, %v971
        %v987 = vmax.f32 %v973, 0.0
        %v988 = vmax.f32 %v974, 0.0
        %v989 = vmax.f32 %v975, 0.0
        %v990 = vmax.f32 %v976, 0.0
        %v991 = vmax.f32 %v977, 0.0
        %v992 = vmax.f32 %v978, 0.0
        %v993 = vmax.f32 %v979, 0.0
        %v994 = vmax.f32 %v980, 0.0
        %v995 = vmax.f32 %v981, 0.0
        %v996 = vmax.f32 %v982, 0.0
        %v997 = vmax.f32 %v983, 0.0
        %v998 = vmax.f32 %v984, 0.0
        %v999 = vmax.f32 %v985, 0.0
        %v1000 = vmax.f32 %v986, 0.0
        %v1001 = vld [vmem:[%s6] sm:$0xf]
        %v1002 = vld [vmem:[%s6 + $0x4] sm:$0xf]
        %v1003 = vld [vmem:[%s6 + $0x8] sm:$0xf]
        %v1004 = vpack.c.bf16 %v989, %v987
        %v1005 = vpack.c.bf16 %v990, %v988
        %v1006 = vpack.c.bf16 %v993, %v991
        %v1007 = vpack.c.bf16 %v994, %v992
        %v1008 = vpack.c.bf16 %v997, %v995
        %v1009 = vpack.c.bf16 %v998, %v996
        %v1010 = vpack.c.bf16 %v999, %v999
        %v1011 = vpack.c.bf16 %v1000, %v1000
        %v1012 = vld [vmem:[%s7] sm:$0xff]
        %v1013 = vld [vmem:[%s7 + $0x8] sm:$0xff]
        %v1014 = vld [vmem:[%s7 + $0x10] sm:$0xff]
        %1016 = vset.pattern.permute.xlu0 0
        %1017 = vperm.xlu0 %1016, %v1012
        %v1018 = vpop.permute.xlu0 %1017
        %1021 = vset.pattern.permute.xlu0 0
        %1022 = vperm.xlu0 %1021, %v1013
        %v1023 = vpop.permute.xlu0 %1022
        %1026 = vset.pattern.permute.xlu0 0
        %1027 = vperm.xlu0 %1026, %v1014
        %v1028 = vpop.permute.xlu0 %1027
        %v1033 = vunpack.c.l.b16 %v1001
        %v1034 = vunpack.c.l.b16 %v1002
        %v1035 = vunpack.c.l.b16 %v1003
        %v1036 = vpack.c.b16 %v1034, %v1033
        %v1037 = vpack.c.b16 %v1035, %v1035
        %vm1038 = vcmask 400384
        %v1040 = vsel %vm1038, %v1036, 0
        %v1043 = vsel %vm1038, %v1037, 0
        %vm1045 = vcmask 1040384
        %v1046 = vsel 0, 4294967295, 65535
        %v1047 = vsel %vm1045, %v1046, 0
        %v1049 = vand.u32 %v1010, %v1047
        %v1052 = vand.u32 %v1011, %v1047
        %1054 = vmatprep.subr.bf16.mxu0 %v1005
        %1055 = vmatpush1.bf16.msra.mxu0 %v1004
        %1056 = vmatprep.subr.bf16.mxu0 %v1007
        %1057 = vmatpush1.bf16.msra.mxu0 %v1006
        %1058 = vmatprep.subr.bf16.mxu0 %v1009
        %1059 = vmatpush1.bf16.msra.mxu0 %v1008
        %1060 = vmatprep.subr.bf16.mxu0 %v1052
        %1061 = vmatpush1.bf16.msra.mxu0 %v1049
        %1062 = vmatprep.subr.bf16.mxu0 0
        %1063 = vmatpush1.bf16.msra.mxu0 0
        %1064 = vmatprep.subr.bf16.mxu0 0
        %1065 = vmatpush1.bf16.msra.mxu0 0
        %1066 = vmatprep.subr.bf16.mxu0 0
        %1067 = vmatpush1.bf16.msra.mxu0 0
        %1068 = vmatprep.subr.bf16.mxu0 0
        %1069 = vmatpush1.bf16.msra.mxu0 0
        %1070 = vmatprep.subr.bf16.mxu0 0
        %1071 = vmatpush1.bf16.msra.mxu0 0
        %1072 = vmatprep.subr.bf16.mxu0 0
        %1073 = vmatpush1.bf16.msra.mxu0 0
        %1074 = vmatprep.subr.bf16.mxu0 0
        %1075 = vmatpush1.bf16.msra.mxu0 0
        %1076 = vmatprep.subr.bf16.mxu0 0
        %1077 = vmatpush1.bf16.msra.mxu0 0
        %1078 = vmatprep.subr.bf16.mxu0 0
        %1079 = vmatpush1.bf16.msra.mxu0 0
        %1080 = vmatprep.subr.bf16.mxu0 0
        %1081 = vmatpush1.bf16.msra.mxu0 0
        %1082 = vmatprep.subr.bf16.mxu0 0
        %1083 = vmatpush1.bf16.msra.mxu0 0
        %1084 = vmatprep.subr.bf16.mxu0 0
        %1085 = vmatpush1.bf16.msra.mxu0 0
        %1086 = vmatprep.mubr.bf16.mxu0 0
        %1087 = vmatmul.mubr.bf16.gmra.mrb[0].mxu0 %v1040
        %v1088 = vpop.f32.mrb[0].mxu0
        %v1089 = vadd.f32 %v1018, %v1088
        %v1090 = vpop.f32.mrb[0].mxu0
        %v1091 = vadd.f32 %v1018, %v1090
        %v1092 = vpop.f32.mrb[0].mxu0
        %v1093 = vadd.f32 %v1023, %v1092
        %v1094 = vpop.f32.mrb[0].mxu0
        %v1095 = vadd.f32 %v1023, %v1094
        %1096 = vmatprep.mubr.bf16.mxu0 0
        %1097 = vmatmul.mubr.bf16.gmra.mrb[0].mxu0 %v1043
        %v1098 = vpop.f32.mrb[0].mxu0
        %v1099 = vadd.f32 %v1028, %v1098
        %v1100 = vpop.f32.mrb[0].mxu0
        %v1101 = vadd.f32 %v1028, %v1100
        %v1102 = vpop.f32.mrb[0].mxu0
        %v1103 = vpop.f32.mrb[0].mxu0
        %1104 = vdwg.mxu0
        %v1105 = vmax.f32 %v1089, 0.0
        %v1106 = vmax.f32 %v1091, 0.0
        %v1107 = vmax.f32 %v1093, 0.0
        %v1108 = vmax.f32 %v1095, 0.0
        %v1109 = vmax.f32 %v1099, 0.0
        %v1110 = vmax.f32 %v1101, 0.0
        %v1111 = vld [vmem:[%s8] sm:$0x1]
        %v1112 = vpack.c.bf16 %v1107, %v1105
        %v1113 = vpack.c.bf16 %v1108, %v1106
        %v1114 = vpack.c.bf16 %v1109, %v1109
        %v1115 = vpack.c.bf16 %v1110, %v1110
        %v1116 = vld [vmem:[#allocation2] sm:$0x1]
        %1118 = vset.pattern.permute.xlu0 0
        %1119 = vperm.xlu0 %1118, %v1116
        %v1120 = vpop.permute.xlu0 %1119
        %v1122 = vlaneseq
        %v1123 = vshrl.u32 %v1122, 7
        %v1124 = vsub.s32 0, %v1123
        %v1125 = vrot.slane %v1120, %v1124
        %v1127 = vsel %vm768, %v1111, 0
        %v1130 = vsel %vm781, %v1114, 0
        %v1133 = vsel %vm781, %v1115, 0
        %1135 = vmatprep.subr.bf16.mxu0 %v1113
        %1136 = vmatpush1.bf16.msra.mxu0 %v1112
        %1137 = vmatprep.subr.bf16.mxu0 %v1133
        %1138 = vmatpush1.bf16.msra.mxu0 %v1130
        %1139 = vmatprep.subr.bf16.mxu0 0
        %1140 = vmatpush1.bf16.msra.mxu0 0
        %1141 = vmatprep.subr.bf16.mxu0 0
        %1142 = vmatpush1.bf16.msra.mxu0 0
        %1143 = vmatprep.subr.bf16.mxu0 0
        %1144 = vmatpush1.bf16.msra.mxu0 0
        %1145 = vmatprep.subr.bf16.mxu0 0
        %1146 = vmatpush1.bf16.msra.mxu0 0
        %1147 = vmatprep.subr.bf16.mxu0 0
        %1148 = vmatpush1.bf16.msra.mxu0 0
        %1149 = vmatprep.subr.bf16.mxu0 0
        %1150 = vmatpush1.bf16.msra.mxu0 0
        %1151 = vmatprep.subr.bf16.mxu0 0
        %1152 = vmatpush1.bf16.msra.mxu0 0
        %1153 = vmatprep.subr.bf16.mxu0 0
        %1154 = vmatpush1.bf16.msra.mxu0 0
        %1155 = vmatprep.subr.bf16.mxu0 0
        %1156 = vmatpush1.bf16.msra.mxu0 0
        %1157 = vmatprep.subr.bf16.mxu0 0
        %1158 = vmatpush1.bf16.msra.mxu0 0
        %1159 = vmatprep.subr.bf16.mxu0 0
        %1160 = vmatpush1.bf16.msra.mxu0 0
        %1161 = vmatprep.subr.bf16.mxu0 0
        %1162 = vmatpush1.bf16.msra.mxu0 0
        %1163 = vmatprep.subr.bf16.mxu0 0
        %1164 = vmatpush1.bf16.msra.mxu0 0
        %1165 = vmatprep.subr.bf16.mxu0 0
        %1166 = vmatpush1.bf16.msra.mxu0 0
        %1167 = vmatprep.mubr.bf16.mxu0 0
        %1168 = vmatmul.mubr.bf16.gmra.mrb[0].mxu0 %v1127
        %v1169 = vpop.f32.mrb[0].mxu0
        %v1170 = vadd.f32 %v1125, %v1169
        %v1171 = vpop.f32.mrb[0].mxu0
        %v1172 = vadd.f32 %v1125, %v1171
        %v1173 = vpop.f32.mrb[0].mxu0
        %v1174 = vpop.f32.mrb[0].mxu0
        %1175 = vdwg.mxu0
        %v1176 = vsub.f32 0.0, %v1170
        %v1177 = vsub.f32 0.0, %v1172
        %v1178 = vmul.f32 %v1176, 1.442695
        %v1179 = vpow.pop %v1178
        %v1180 = vmul.f32 %v1177, 1.442695
        %v1181 = vpow.pop %v1180
        %v1182 = vadd.f32 %v1179, 1.0
        %v1183 = vadd.f32 %v1181, 1.0
        %v1184 = vrcp.pop %v1182
        %v1185 = vmul.f32 1.0, %v1184
        %v1186 = vrcp.pop %v1183
        %v1187 = vmul.f32 1.0, %v1186
        %v1190 = vcombine.low %v1185, %v1187
        %v1192 = vunpack.c.l.s4 1966171168
        %v1193 = vunpack.c.0.s8 %v1192
        %v1194 = vlaneseq
        %v1195 = vshrl.u32 %v1194, 7
        %v1196 = vsub.s32 %v1193, %v1195
        %v1197 = vrot.slane %v1190, %v1196
        %v1199 = vunpack.c.l.s4 1966171168
        %v1200 = vunpack.c.0.s8 %v1199
        %v1201 = vlaneseq
        %v1202 = vshrl.u32 %v1201, 7
        %v1203 = vsub.s32 %v1200, %v1202
        %v1204 = vrot.slane %v1197, %v1203
        %v1206 = vlaneseq
        %vm1207 = vcmp.ge.s32.totalorder %v1206, 0
        %vm1208 = vcmp.lt.s32.totalorder %v1206, 256
        %vm1209 = vmand %vm1207, %vm1208
        %1210 = vst.msk [vmem:[%s444] sm:$0x3] %vm1209, %v1204
        %s1211 = sand.u32 %s258, 1
        %s1212 = scalar_lea.sflag [#allocation5], %s1211
        %s1213 = sand.u32 %s258, 1
        %s1214 = smul.addr %s1213, 2
        %s1215 = scalar_lea.vmem [#allocation9], %s1214
        // Predicated region
        $region92: #{tpu_custom_call.1} parent=78 // pred_check
          %p1216 = pneg %p268
        $region93: #{tpu_custom_call.1} parent=78 // pred_check_branch
          %1218 = sbr.rel (%p1216) target = $region95
        $region94: #{tpu_custom_call.1} parent=78 // pred_region
          %s1219 = smul.u32 2, %s30
          %s1221 = ssub.s32 32, 32
          %1222 = vsyncadd %s1212, %s1221
          %s1223 = smul.addr %s1219, 16
          %s1224 = scalar_lea.hbm %s10, %s1223
          %s1226 = sshll.u32 %s1215, 4
          %s1227 = int_to_ptr.vmem [resolvable:$true] %s1226
          %1229 = dma.vmem_to_hbm [thread:$0]  %s1227, 32, %s1224, %s1212
        $region95: #{tpu_custom_call.1} parent=78 // pred_fallthru
          _
      $region79: #{tpu_custom_call.1} parent=5 // pred_fallthru
        _
      %p1230 = scmp.le.s32.totalorder 2, %s25
      // Predicated region
      $region96: #{tpu_custom_call.1} parent=5 // pred_check
        %p1231 = pneg %p1230
      $region97: #{tpu_custom_call.1} parent=5 // pred_check_branch
        %1233 = sbr.rel (%p1231) target = $region99
      $region98: #{tpu_custom_call.1} parent=5 // pred_region
        %s1234 = ssub.s32 %s25, 2
        // Predicated region
        $region100: #{tpu_custom_call.1} parent=98 // pred_check
          %p1235 = pneg %p274
        $region101: #{tpu_custom_call.1} parent=98 // pred_check_branch
          %1237 = sbr.rel (%p1235) target = $region103
        $region102: #{tpu_custom_call.1} parent=98 // pred_region
          %s1238 = sand.u32 %s259, 1
          %s1239 = scalar_lea.sflag [#allocation5], %s1238
          %s1240 = sand.u32 %s259, 1
          %s1241 = smul.addr %s1240, 2
          %s1242 = scalar_lea.vmem [#allocation9], %s1241
          %1243 = dma.done %s1239, 32
        $region103: #{tpu_custom_call.1} parent=98 // pred_fallthru
          _
      $region99: #{tpu_custom_call.1} parent=5 // pred_fallthru
        _
    $region6: #{tpu_custom_call.1} parent=1 // loop_footer
      %s29 = sadd.s32 1, %s25
    $region7: #{tpu_custom_call.1} parent=1 // loop_footer_branch
      %24 = sbr.rel target = $region3
    $region8: #{tpu_custom_call.1} parent=1 // loop_exit
      _
    %1244 = vsyncpa [#allocation4], 1
    %s1245 = scalar_lea.sflag [#allocation4], 1
    %1246 = vsyncpa %s1245, 1
    %1247 = vsyncpa [#allocation8], 1
    %1248 = vsyncpa [#allocation5], 1
    %s1249 = scalar_lea.sflag [#allocation5], 1
    %1250 = vsyncpa %s1249, 1

</llo_original>
